<compile_context>
chip_gen: v5e
topology: v5e:2x2
jax: 0.10.0
libtpu: 0.0.40
codegen_flags: <defaults>
</compile_context>

<pallas_src>
import functools

import jax
import jax.numpy as jnp
from jax.experimental import pallas as pl
from jax.experimental.pallas import tpu as pltpu


def _round_up(x, m):
    return ((x + m - 1) // m) * m


def _lagrange_loss_kernel(n_total, tiles_per_split, need_mask,
                          feature_ref, target_ref,
                          e1_out, e2_out, col_out,
                          e1_acc, e2_acc, col_acc):
    s = pl.program_id(0)          # row-split index ("parallel" megacore axis)
    t = pl.program_id(1)          # row-tile index within the split ("arbitrary")
    tn, c = feature_ref.shape

    @pl.when(t == 0)
    def _init():
        e1_acc[...] = jnp.zeros_like(e1_acc)
        e2_acc[...] = jnp.zeros_like(e2_acc)
        col_acc[...] = jnp.zeros_like(col_acc)

    f = feature_ref[...].astype(jnp.float32)            # (TN, C), cast on VPU
    tgt = target_ref[...]                                # (TN, 1) int32

    if need_mask:
        # Only traced when the grid over-covers N (ragged last tile and/or
        # clamped duplicate tiles); zero cost in the evenly-divisible case.
        row_ids = ((s * tiles_per_split + t) * tn
                   + jax.lax.broadcasted_iota(jnp.int32, (tn, 1), 0))
        valid = row_ids < n_total                        # (TN, 1) bool
        f = jnp.where(valid, f, 0.0)                     # single masked tensor

    # --- err3 partial: column sums accumulated across row tiles ---
    col_acc[...] += jnp.sum(f, axis=0, keepdims=True)                # (1, C)

    # --- err2 partial: |1 - row_sum| per row ---
    row_sum = jnp.sum(f, axis=1, keepdims=True)                      # (TN, 1)
    e2_row = jnp.abs(1.0 - row_sum)

    # --- err1 partial: logsumexp(row) - target logit per row ---
    m = jnp.max(f, axis=1, keepdims=True)                            # (TN, 1)
    lse = m + jnp.log(jnp.sum(jnp.exp(f - m), axis=1, keepdims=True))
    col_ids = jax.lax.broadcasted_iota(jnp.int32, (1, c), 1)         # (1, C)
    tgt_logit = jnp.sum(jnp.where(col_ids == tgt, f, 0.0),
                        axis=1, keepdims=True)                       # (TN, 1)
    e1_row = lse - tgt_logit

    if need_mask:
        e1_row = jnp.where(valid, e1_row, 0.0)
        e2_row = jnp.where(valid, e2_row, 0.0)

    e1_acc[...] += jnp.sum(e1_row, keepdims=True)                    # (1, 1)
    e2_acc[...] += jnp.sum(e2_row, keepdims=True)                    # (1, 1)

    # --- write this split's raw partials once, on its last tile ---
    @pl.when(t == tiles_per_split - 1)
    def _finalize():
        e1_out[0] = e1_acc[...]
        e2_out[0] = e2_acc[...]
        col_out[0] = col_acc[...]


@functools.partial(jax.jit, static_argnames=("block_rows", "num_splits"))
def lagrange_loss(feature, distances, target, *, block_rows=None, num_splits=None):
    # `distances` is unused, matching the reference module.
    del distances
    n, c = feature.shape
    target_2d = target.astype(jnp.int32).reshape(n, 1)

    itemsize = jnp.dtype(feature.dtype).itemsize
    mult = max(8, 32 // itemsize)        # sublane multiple: f32 -> 8, bf16 -> 16, int8 -> 32
    lane_c = _round_up(c, 128)           # lane-padded columns in VMEM

    # Megacore: split rows into (up to) 2 halves on a leading "parallel" grid
    # axis so v7x's 2 TensorCores each take one half.  Harmless (serial) on
    # single-core chips.
    if num_splits is None:
        num_splits = 2 if n >= 1024 else 1
    n_splits = max(1, min(2, int(num_splits)))

    # Row tile from a VMEM byte budget: padded per-row footprint of the
    # double-buffered feature + target blocks (~20 MiB for the input buffers).
    per_row_bytes = 2 * lane_c * itemsize + 2 * 128 * 4
    budget_rows = max(mult, ((20 << 20) // per_row_bytes) // mult * mult)

    if block_rows is None:
        tn = min(budget_rows, _round_up(pl.cdiv(n, n_splits), mult))
    else:
        tn = min(budget_rows, _round_up(int(block_rows), mult))
    if tn >= n:
        tn = n                            # full-dim block is always legal
    total_tiles = pl.cdiv(n, tn)
    tiles_per_split = pl.cdiv(total_tiles, n_splits)
    need_mask = (n_splits * tiles_per_split * tn != n)
    last_block = total_tiles - 1

    def row_map(s, t):
        # Clamp so no block starts past the end of the array; rows of clamped
        # or ragged blocks are masked out in-kernel via their logical index.
        return (jnp.minimum(s * tiles_per_split + t, last_block), 0)

    # Explicit VMEM limit: actual buffers + slack, capped well inside v7x's
    # 64 MiB physical VMEM (v5e/v6e have 128 MiB and are also fine).
    buffers_bytes = tn * per_row_bytes
    vmem_limit = max(16 << 20, min(32 << 20, buffers_bytes + (8 << 20)))

    kernel = functools.partial(_lagrange_loss_kernel, n, tiles_per_split, need_mask)

    e1_parts, e2_parts, col_parts = pl.pallas_call(
        kernel,
        out_shape=(
            jax.ShapeDtypeStruct((n_splits, 1, 1), jnp.float32),
            jax.ShapeDtypeStruct((n_splits, 1, 1), jnp.float32),
            jax.ShapeDtypeStruct((n_splits, 1, c), jnp.float32),
        ),
        grid_spec=pltpu.PrefetchScalarGridSpec(
            num_scalar_prefetch=0,
            grid=(n_splits, tiles_per_split),
            in_specs=[
                pl.BlockSpec((tn, c), row_map),
                pl.BlockSpec((tn, 1), row_map),
            ],
            out_specs=[
                pl.BlockSpec((1, 1, 1), lambda s, t: (s, 0, 0)),
                pl.BlockSpec((1, 1, 1), lambda s, t: (s, 0, 0)),
                pl.BlockSpec((1, 1, c), lambda s, t: (s, 0, 0)),
            ],
            scratch_shapes=[
                pltpu.VMEM((1, 1), jnp.float32),   # err1 numerator accumulator
                pltpu.VMEM((1, 1), jnp.float32),   # err2 accumulator
                pltpu.VMEM((1, c), jnp.float32),   # column-sum accumulator (err3)
            ],
        ),
        compiler_params=pltpu.CompilerParams(
            dimension_semantics=("parallel", "arbitrary"),
            vmem_limit_bytes=vmem_limit,
        ),
    )(feature, target_2d)   # feature passed in original dtype (cast in-kernel)

    # Tiny XLA epilogue combining the per-split partial sums.
    err1 = jnp.sum(e1_parts) / n
    err2 = jnp.sum(e2_parts)
    err3 = jnp.sum(jnp.abs(1.0 - jnp.sum(col_parts, axis=(0, 1))))
    return err1 + err2 + err3


def lagrange_loss_ref(feature, distances, target):
    # Pure-JAX reference for verification.
    del distances
    f = feature.astype(jnp.float32)
    logp = jax.nn.log_softmax(f, axis=1)
    err1 = -jnp.mean(
        jnp.take_along_axis(logp, target[:, None].astype(jnp.int32), axis=1))
    err2 = jnp.sum(jnp.abs(1.0 - jnp.sum(f, axis=1)))
    err3 = jnp.sum(jnp.abs(1.0 - jnp.sum(f, axis=0)))
    return err1 + err2 + err3


if __name__ == "__main__":
    key = jax.random.PRNGKey(0)

    # --- Test 1: small single-tile case (module-typical use) ---
    k_feat, k_dist, k_tgt = jax.random.split(key, 3)
    N, C = 8, 32
    feature = jax.random.normal(k_feat, (N, C), dtype=jnp.float32)
    distances = jax.random.normal(k_dist, (N, N), dtype=jnp.float32)   # unused
    target = jax.random.randint(k_tgt, (N,), 0, C, dtype=jnp.int32)

    out = jax.block_until_ready(lagrange_loss(feature, distances, target))
    ref = jax.block_until_ready(lagrange_loss_ref(feature, distances, target))
    assert jnp.allclose(out, ref, rtol=1e-5, atol=1e-5), (out, ref)

    # --- Test 2: default path on larger N -> 2-way row split + ragged mask ---
    k_feat2, k_tgt2 = jax.random.split(jax.random.PRNGKey(1), 2)
    N2, C2 = 1037, 32
    feature2 = jax.random.normal(k_feat2, (N2, C2), dtype=jnp.float32)
    distances2 = jnp.zeros((N2, N2), dtype=jnp.float32)                # unused
    target2 = jax.random.randint(k_tgt2, (N2,), 0, C2, dtype=jnp.int32)

    out2 = jax.block_until_ready(lagrange_loss(feature2, distances2, target2))
    ref2 = jax.block_until_ready(lagrange_loss_ref(feature2, distances2, target2))
    assert jnp.allclose(out2, ref2, rtol=1e-4, atol=1e-4), (out2, ref2)

    # --- Test 3: forced small tiles -> multi-tile accumulation per split,
    #     clamped duplicate trailing tile, ragged masking ---
    out3 = jax.block_until_ready(
        lagrange_loss(feature2, distances2, target2, block_rows=128, num_splits=2))
    assert jnp.allclose(out3, ref2, rtol=1e-4, atol=1e-4), (out3, ref2)

    # --- Test 4: bf16 input -> 16-row sublane multiple + in-kernel f32 cast ---
    feature4 = feature2.astype(jnp.bfloat16)
    out4 = jax.block_until_ready(lagrange_loss(feature4, distances2, target2))
    ref4 = jax.block_until_ready(lagrange_loss_ref(feature4, distances2, target2))
    assert jnp.allclose(out4, ref4, rtol=1e-4, atol=1e-3), (out4, ref4)

    print("KERNEL_OK")
</pallas_src>

<mosaic_0001>
module attributes {stable_mosaic.version = 11 : i64} {
  func.func @_lagrange_loss_kernel(%arg0: i32, %arg1: i32, %arg2: memref<8x32xf32, #tpu.memory_space<vmem>>, %arg3: memref<8x1xi32, #tpu.memory_space<vmem>>, %arg4: memref<1x1x1xf32, #tpu.memory_space<vmem>>, %arg5: memref<1x1x1xf32, #tpu.memory_space<vmem>>, %arg6: memref<1x1x32xf32, #tpu.memory_space<vmem>>, %arg7: memref<1x1xf32, #tpu.memory_space<vmem>>, %arg8: memref<1x1xf32, #tpu.memory_space<vmem>>, %arg9: memref<1x32xf32, #tpu.memory_space<vmem>>) attributes {dimension_semantics = [#tpu.dimension_semantics<parallel>, #tpu.dimension_semantics<arbitrary>], iteration_bounds = array<i64: 1, 1>, scalar_prefetch = 0 : i64, scratch_operands = 3 : i64, tpu.core_type = #tpu.core_type<tc>, window_params = [{transform_indices = @transform_0, window_bounds = array<i64: 8, 32>}, {transform_indices = @transform_1, window_bounds = array<i64: 8, 1>}, {transform_indices = @transform_2, window_bounds = array<i64: 1, 1, 1>}, {transform_indices = @transform_3, window_bounds = array<i64: 1, 1, 1>}, {transform_indices = @transform_4, window_bounds = array<i64: 1, 1, 32>}]} {
    %c0_i32 = arith.constant 0 : i32
    %0 = arith.cmpi eq, %arg1, %c0_i32 : i32
    %1 = arith.extui %0 : i1 to i32
    %c0_i32_0 = arith.constant 0 : i32
    %2 = arith.cmpi ne, %1, %c0_i32_0 : i32
    scf.if %2 {
      %cst_26 = arith.constant 0.000000e+00 : f32
      %52 = vector.broadcast %cst_26 : f32 to vector<1x1xf32>
      %c0_27 = arith.constant 0 : index
      %c0_28 = arith.constant 0 : index
      %53 = vector.load %arg7[%c0_27, %c0_28] : memref<1x1xf32, #tpu.memory_space<vmem>>, vector<1x1xf32>
      tpu.vector_store %arg7[%c0_27, %c0_28], %52 {strides = array<i32>} : memref<1x1xf32, #tpu.memory_space<vmem>>, vector<1x1xf32>,
      %cst_29 = arith.constant 0.000000e+00 : f32
      %54 = vector.broadcast %cst_29 : f32 to vector<1x1xf32>
      %c0_30 = arith.constant 0 : index
      %c0_31 = arith.constant 0 : index
      %55 = vector.load %arg8[%c0_30, %c0_31] : memref<1x1xf32, #tpu.memory_space<vmem>>, vector<1x1xf32>
      tpu.vector_store %arg8[%c0_30, %c0_31], %54 {strides = array<i32>} : memref<1x1xf32, #tpu.memory_space<vmem>>, vector<1x1xf32>,
      %cst_32 = arith.constant 0.000000e+00 : f32
      %56 = vector.broadcast %cst_32 : f32 to vector<1x32xf32>
      %c0_33 = arith.constant 0 : index
      %c0_34 = arith.constant 0 : index
      %57 = vector.load %arg9[%c0_33, %c0_34] : memref<1x32xf32, #tpu.memory_space<vmem>>, vector<1x32xf32>
      tpu.vector_store %arg9[%c0_33, %c0_34], %56 {strides = array<i32>} : memref<1x32xf32, #tpu.memory_space<vmem>>, vector<1x32xf32>,
    } else {
    }
    %c0 = arith.constant 0 : index
    %c0_1 = arith.constant 0 : index
    %3 = vector.load %arg2[%c0, %c0_1] : memref<8x32xf32, #tpu.memory_space<vmem>>, vector<8x32xf32>
    %c0_2 = arith.constant 0 : index
    %c0_3 = arith.constant 0 : index
    %4 = vector.load %arg3[%c0_2, %c0_3] : memref<8x1xi32, #tpu.memory_space<vmem>>, vector<8x1xi32>
    %c0_4 = arith.constant 0 : index
    %c0_5 = arith.constant 0 : index
    %5 = vector.load %arg9[%c0_4, %c0_5] : memref<1x32xf32, #tpu.memory_space<vmem>>, vector<1x32xf32>
    %cst = arith.constant dense<0.000000e+00> : vector<32xf32>
    %6 = vector.multi_reduction <add>, %3, %cst [0] : vector<8x32xf32> to vector<32xf32>
    %7 = vector.shape_cast %6 : vector<32xf32> to vector<1x32xf32>
    %8 = arith.addf %5, %7 : vector<1x32xf32>
    %c0_6 = arith.constant 0 : index
    %c0_7 = arith.constant 0 : index
    %9 = vector.load %arg9[%c0_6, %c0_7] : memref<1x32xf32, #tpu.memory_space<vmem>>, vector<1x32xf32>
    tpu.vector_store %arg9[%c0_6, %c0_7], %8 {strides = array<i32>} : memref<1x32xf32, #tpu.memory_space<vmem>>, vector<1x32xf32>,
    %cst_8 = arith.constant dense<0.000000e+00> : vector<8xf32>
    %10 = vector.multi_reduction <add>, %3, %cst_8 [1] : vector<8x32xf32> to vector<8xf32>
    %11 = vector.shape_cast %10 : vector<8xf32> to vector<8x1xf32>
    %cst_9 = arith.constant 1.000000e+00 : f32
    %12 = vector.broadcast %cst_9 : f32 to vector<8x1xf32>
    %13 = arith.subf %12, %11 : vector<8x1xf32>
    %14 = math.absf %13 : vector<8x1xf32>
    %cst_10 = arith.constant dense<0xFF800000> : vector<8xf32>
    %15 = vector.multi_reduction <maximumf>, %3, %cst_10 [1] : vector<8x32xf32> to vector<8xf32>
    %16 = vector.shape_cast %15 : vector<8xf32> to vector<8x1xf32>
    %17 = vector.broadcast %16 : vector<8x1xf32> to vector<8x32xf32>
    %18 = arith.subf %3, %17 : vector<8x32xf32>
    %19 = math.exp %18 : vector<8x32xf32>
    %cst_11 = arith.constant dense<0.000000e+00> : vector<8xf32>
    %20 = vector.multi_reduction <add>, %19, %cst_11 [1] : vector<8x32xf32> to vector<8xf32>
    %21 = vector.shape_cast %20 : vector<8xf32> to vector<8x1xf32>
    %22 = math.log %21 : vector<8x1xf32>
    %23 = arith.addf %16, %22 : vector<8x1xf32>
    %24 = tpu.iota {dimensions = array<i32: 1>} : vector<1x32xi32>
    %25 = vector.broadcast %24 : vector<1x32xi32> to vector<8x32xi32>
    %26 = vector.broadcast %4 : vector<8x1xi32> to vector<8x32xi32>
    %27 = arith.cmpi eq, %25, %26 : vector<8x32xi32>
    %cst_12 = arith.constant 0.000000e+00 : f32
    %28 = vector.broadcast %cst_12 : f32 to vector<8x32xf32>
    %29 = arith.select %27, %3, %28 : vector<8x32xi1>, vector<8x32xf32>
    %cst_13 = arith.constant dense<0.000000e+00> : vector<8xf32>
    %30 = vector.multi_reduction <add>, %29, %cst_13 [1] : vector<8x32xf32> to vector<8xf32>
    %31 = vector.shape_cast %30 : vector<8xf32> to vector<8x1xf32>
    %32 = arith.subf %23, %31 : vector<8x1xf32>
    %c0_14 = arith.constant 0 : index
    %c0_15 = arith.constant 0 : index
    %33 = vector.load %arg7[%c0_14, %c0_15] : memref<1x1xf32, #tpu.memory_space<vmem>>, vector<1x1xf32>
    %34 = vector.shape_cast %32 : vector<8x1xf32> to vector<1x8x1xf32>
    %cst_16 = arith.constant dense<0.000000e+00> : vector<1xf32>
    %35 = vector.multi_reduction <add>, %34, %cst_16 [1, 2] : vector<1x8x1xf32> to vector<1xf32>
    %36 = vector.shape_cast %35 : vector<1xf32> to vector<1x1x1xf32>
    %37 = vector.extract %36[0, 0, 0] : f32 from vector<1x1x1xf32>
    %38 = vector.broadcast %37 : f32 to vector<1x1xf32>
    %39 = arith.addf %33, %38 : vector<1x1xf32>
    %c0_17 = arith.constant 0 : index
    %c0_18 = arith.constant 0 : index
    %40 = vector.load %arg7[%c0_17, %c0_18] : memref<1x1xf32, #tpu.memory_space<vmem>>, vector<1x1xf32>
    tpu.vector_store %arg7[%c0_17, %c0_18], %39 {strides = array<i32>} : memref<1x1xf32, #tpu.memory_space<vmem>>, vector<1x1xf32>,
    %c0_19 = arith.constant 0 : index
    %c0_20 = arith.constant 0 : index
    %41 = vector.load %arg8[%c0_19, %c0_20] : memref<1x1xf32, #tpu.memory_space<vmem>>, vector<1x1xf32>
    %42 = vector.shape_cast %14 : vector<8x1xf32> to vector<1x8x1xf32>
    %cst_21 = arith.constant dense<0.000000e+00> : vector<1xf32>
    %43 = vector.multi_reduction <add>, %42, %cst_21 [1, 2] : vector<1x8x1xf32> to vector<1xf32>
    %44 = vector.shape_cast %43 : vector<1xf32> to vector<1x1x1xf32>
    %45 = vector.extract %44[0, 0, 0] : f32 from vector<1x1x1xf32>
    %46 = vector.broadcast %45 : f32 to vector<1x1xf32>
    %47 = arith.addf %41, %46 : vector<1x1xf32>
    %c0_22 = arith.constant 0 : index
    %c0_23 = arith.constant 0 : index
    %48 = vector.load %arg8[%c0_22, %c0_23] : memref<1x1xf32, #tpu.memory_space<vmem>>, vector<1x1xf32>
    tpu.vector_store %arg8[%c0_22, %c0_23], %47 {strides = array<i32>} : memref<1x1xf32, #tpu.memory_space<vmem>>, vector<1x1xf32>,
    %c0_i32_24 = arith.constant 0 : i32
    %49 = arith.cmpi eq, %arg1, %c0_i32_24 : i32
    %50 = arith.extui %49 : i1 to i32
    %c0_i32_25 = arith.constant 0 : i32
    %51 = arith.cmpi ne, %50, %c0_i32_25 : i32
    scf.if %51 {
      %c0_26 = arith.constant 0 : index
      %c0_27 = arith.constant 0 : index
      %52 = vector.load %arg7[%c0_26, %c0_27] : memref<1x1xf32, #tpu.memory_space<vmem>>, vector<1x1xf32>
      %c0_28 = arith.constant 0 : index
      %c0_29 = arith.constant 0 : index
      %c0_30 = arith.constant 0 : index
      %53 = vector.load %arg4[%c0_28, %c0_29, %c0_30] : memref<1x1x1xf32, #tpu.memory_space<vmem>>, vector<1x1x1xf32>
      %54 = vector.shape_cast %53 : vector<1x1x1xf32> to vector<1x1xf32>
      %55 = vector.shape_cast %52 : vector<1x1xf32> to vector<1x1x1xf32>
      tpu.vector_store %arg4[%c0_28, %c0_29, %c0_30], %55 {strides = array<i32>} : memref<1x1x1xf32, #tpu.memory_space<vmem>>, vector<1x1x1xf32>,
      %c0_31 = arith.constant 0 : index
      %c0_32 = arith.constant 0 : index
      %56 = vector.load %arg8[%c0_31, %c0_32] : memref<1x1xf32, #tpu.memory_space<vmem>>, vector<1x1xf32>
      %c0_33 = arith.constant 0 : index
      %c0_34 = arith.constant 0 : index
      %c0_35 = arith.constant 0 : index
      %57 = vector.load %arg5[%c0_33, %c0_34, %c0_35] : memref<1x1x1xf32, #tpu.memory_space<vmem>>, vector<1x1x1xf32>
      %58 = vector.shape_cast %57 : vector<1x1x1xf32> to vector<1x1xf32>
      %59 = vector.shape_cast %56 : vector<1x1xf32> to vector<1x1x1xf32>
      tpu.vector_store %arg5[%c0_33, %c0_34, %c0_35], %59 {strides = array<i32>} : memref<1x1x1xf32, #tpu.memory_space<vmem>>, vector<1x1x1xf32>,
      %c0_36 = arith.constant 0 : index
      %c0_37 = arith.constant 0 : index
      %60 = vector.load %arg9[%c0_36, %c0_37] : memref<1x32xf32, #tpu.memory_space<vmem>>, vector<1x32xf32>
      %c0_38 = arith.constant 0 : index
      %c0_39 = arith.constant 0 : index
      %c0_40 = arith.constant 0 : index
      %61 = vector.load %arg6[%c0_38, %c0_39, %c0_40] : memref<1x1x32xf32, #tpu.memory_space<vmem>>, vector<1x1x32xf32>
      %62 = vector.shape_cast %61 : vector<1x1x32xf32> to vector<1x32xf32>
      %63 = vector.shape_cast %60 : vector<1x32xf32> to vector<1x1x32xf32>
      tpu.vector_store %arg6[%c0_38, %c0_39, %c0_40], %63 {strides = array<i32>} : memref<1x1x32xf32, #tpu.memory_space<vmem>>, vector<1x1x32xf32>,
    } else {
    }
    return
  }
  func.func @transform_0(%arg0: i32, %arg1: i32) -> (i32, i32) {
    %c1_i32 = arith.constant 1 : i32
    %0 = arith.muli %arg0, %c1_i32 : i32
    %1 = arith.addi %0, %arg1 : i32
    %c0_i32 = arith.constant 0 : i32
    %2 = arith.minsi %1, %c0_i32 : i32
    %c0_i32_0 = arith.constant 0 : i32
    %c0_i32_1 = arith.constant 0 : i32
    return %2, %c0_i32_0 : i32, i32
  }
  func.func @transform_1(%arg0: i32, %arg1: i32) -> (i32, i32) {
    %c1_i32 = arith.constant 1 : i32
    %0 = arith.muli %arg0, %c1_i32 : i32
    %1 = arith.addi %0, %arg1 : i32
    %c0_i32 = arith.constant 0 : i32
    %2 = arith.minsi %1, %c0_i32 : i32
    %c0_i32_0 = arith.constant 0 : i32
    %c0_i32_1 = arith.constant 0 : i32
    return %2, %c0_i32_0 : i32, i32
  }
  func.func @transform_2(%arg0: i32, %arg1: i32) -> (i32, i32, i32) {
    %c0_i32 = arith.constant 0 : i32
    %c0_i32_0 = arith.constant 0 : i32
    %c0_i32_1 = arith.constant 0 : i32
    return %arg0, %c0_i32, %c0_i32_0 : i32, i32, i32
  }
  func.func @transform_3(%arg0: i32, %arg1: i32) -> (i32, i32, i32) {
    %c0_i32 = arith.constant 0 : i32
    %c0_i32_0 = arith.constant 0 : i32
    %c0_i32_1 = arith.constant 0 : i32
    return %arg0, %c0_i32, %c0_i32_0 : i32, i32, i32
  }
  func.func @transform_4(%arg0: i32, %arg1: i32) -> (i32, i32, i32) {
    %c0_i32 = arith.constant 0 : i32
    %c0_i32_0 = arith.constant 0 : i32
    %c0_i32_1 = arith.constant 0 : i32
    return %arg0, %c0_i32, %c0_i32_0 : i32, i32, i32
  }
}

</mosaic_0001>

<llo_original>
// kernel: lagrange_loss.1
$region0: #{lagrange_loss.1}
  #allocation0 [shape = 'u32[]', space=smem, size = 0x4, offset = 0x4, fixed_abs, tag = 'smem constant byte address 0x4 - core index']
  #allocation1 [shape = 'u32[72,128]{1,0:T(1,128)}', space=vmem, size = 0x9000, scoped, tag = 'internal scratch']
  #allocation2 [shape = 'f32[1,1]{1,0:T(1,128)}', space=vmem, size = 0x200, scoped, tag = 'scratch operand']
  #allocation3 [shape = 'f32[1,1]{1,0:T(1,128)}', space=vmem, size = 0x200, scoped, tag = 'scratch operand']
  #allocation4 [shape = 'f32[1,32]{1,0:T(1,128)}', space=vmem, size = 0x200, scoped, tag = 'scratch operand']
  %s0 = inlined_call_operand.vmem [shape: f32[8,32], index: 0, kind: input, shape index: {}]
  %s1 = inlined_call_operand.vmem [shape: s32[8,1], index: 1, kind: input, shape index: {}]
  %s2 = inlined_call_operand.hbm [shape: f32[1,1,1], index: 2, kind: output, shape index: {0}]
  %s3 = inlined_call_operand.hbm [shape: f32[1,1,1], index: 3, kind: output, shape index: {1}]
  %s4 = inlined_call_operand.vmem [shape: f32[1,1,32], index: 4, kind: output, shape index: {2}]
  %5 = xla_tuple %s2, %s3, %s4
  %s6 = sld [smem:[#allocation0]]
  $region42: #{lagrange_loss.1} parent=0
    _
  %s8 = ssub.s32 1, %s6
  %s9 = scalar_select 0, %s8, %s6
  $region1: #{lagrange_loss.1} parent=0
    #allocation5 [shape = 'u8[512]{0}', space=vmem, size = 0x400, scoped, tag = 'output window, operand 0, single buffered']
    #allocation6 [shape = 's32[1]{0}', space=sflag, size = 0x4, scoped, tag = 'scoped memory for lagrange_loss.1']
    #allocation7 [shape = 'u8[512]{0}', space=vmem, size = 0x400, scoped, tag = 'output window, operand 1, single buffered']
    #allocation8 [shape = 's32[1]{0}', space=sflag, size = 0x4, scoped, tag = 'scoped memory for lagrange_loss.1']
    %10 = vsyncpa [#allocation6], 0
    %11 = vsyncpa [#allocation8], 0
    // Predicated region
    $region2: #{lagrange_loss.1} parent=1 // pred_check
      _
    $region3: #{lagrange_loss.1} parent=1 // pred_check_branch
      %13 = sbr.rel (0) target = $region5
    $region4: #{lagrange_loss.1} parent=1 // pred_region
      %s14 = sadd.s32 0, 0
      %p15 = scmp.lt.s32.totalorder %s14, 0
      %s16 = scalar_select %p15, %s14, 0
      %p17 = scmp.lt.s32.totalorder %s16, 0
      %s18 = scalar_select %p17, %s16, 0
      %s19 = smul.addr %s18, 8
      %s20 = scalar_lea.vmem %s0, %s19
      %s21 = sadd.s32 0, 0
      %p22 = scmp.lt.s32.totalorder %s21, 0
      %s23 = scalar_select %p22, %s21, 0
    $region5: #{lagrange_loss.1} parent=1 // pred_fallthru
      _
    // Predicated region
    $region6: #{lagrange_loss.1} parent=1 // pred_check
      _
    $region7: #{lagrange_loss.1} parent=1 // pred_check_branch
      %25 = sbr.rel (0) target = $region9
    $region8: #{lagrange_loss.1} parent=1 // pred_region
      %s26 = sadd.s32 0, 0
      %p27 = scmp.lt.s32.totalorder %s26, 0
      %s28 = scalar_select %p27, %s26, 0
      %p29 = scmp.lt.s32.totalorder %s28, 0
      %s30 = scalar_select %p29, %s28, 0
      %s31 = smul.addr %s30, 8
      %s32 = scalar_lea.vmem %s1, %s31
      %s33 = sadd.s32 0, 0
      %p34 = scmp.lt.s32.totalorder %s33, 0
      %s35 = scalar_select %p34, %s33, 0
    $region9: #{lagrange_loss.1} parent=1 // pred_fallthru
      _
    %s36 = sadd.s32 0, 0
    %p37 = scmp.lt.s32.totalorder %s36, 0
    %s38 = scalar_select %p37, %s36, 0
    %p39 = scmp.lt.s32.totalorder %s38, 0
    %s40 = scalar_select %p39, %s38, 0
    %s41 = smul.addr %s40, 8
    %s42 = scalar_lea.vmem %s0, %s41
    %s43 = sadd.s32 0, 0
    %p44 = scmp.lt.s32.totalorder %s43, 0
    %s45 = scalar_select %p44, %s43, 0
    %p46 = scmp.lt.s32.totalorder %s45, 0
    %s47 = scalar_select %p46, %s45, 0
    %s48 = smul.addr %s47, 8
    %s49 = scalar_lea.vmem %s1, %s48
    %s50 = sadd.s32 0, 0
    %p51 = scmp.lt.s32.totalorder %s50, 0
    %s52 = scalar_select %p51, %s50, 0
    %p53 = scmp.lt.s32.totalorder %s52, 0
    %s54 = scalar_select %p53, %s52, 0
    %s55 = smul.addr %s54, 8
    %s56 = scalar_lea.vmem %s0, %s55
    %s57 = sadd.s32 0, 0
    %p58 = scmp.lt.s32.totalorder %s57, 0
    %s59 = scalar_select %p58, %s57, 0
    %s60 = sadd.s32 0, 0
    %p61 = scmp.lt.s32.totalorder %s60, 0
    %s62 = scalar_select %p61, %s60, 0
    %p63 = scmp.lt.s32.totalorder %s62, 0
    %s64 = scalar_select %p63, %s62, 0
    %s65 = smul.addr %s64, 8
    %s66 = scalar_lea.vmem %s1, %s65
    %s67 = sadd.s32 0, 0
    %p68 = scmp.lt.s32.totalorder %s67, 0
    %s69 = scalar_select %p68, %s67, 0
    %p70 = scmp.eq.s32.totalorder 0, 0
    // Predicated region
    $region10: #{lagrange_loss.1} parent=1 // pred_check
      %p71 = pneg %p70
    $region11: #{lagrange_loss.1} parent=1 // pred_check_branch
      %73 = sbr.rel (%p71) target = $region13
    $region12: #{lagrange_loss.1} parent=1 // pred_region
      %vm74 = vcmask 0
      %75 = vst.msk [vmem:[#allocation2] sm:$0x1] %vm74, 0.0
      %76 = vst.msk [vmem:[#allocation3] sm:$0x1] %vm74, 0.0
      %vm77 = vcmask 253952
      %78 = vst.msk [vmem:[#allocation4] sm:$0x1] %vm77, 0.0
    $region13: #{lagrange_loss.1} parent=1 // pred_fallthru
      _
    %v79 = vld [vmem:[%s56] sm:$0xff]
    %v80 = vld [vmem:[%s66] sm:$0xff]
    %v81 = vld [vmem:[#allocation4] sm:$0x1]
    %vm82 = vcmask 261120
    %v83 = vsel %vm82, %v79, 0.0
    %v84 = vrot.slane %v83, 4
    %v85 = vadd.f32 %v83, %v84
    %v86 = vrot.slane %v85, 2
    %v87 = vadd.f32 %v85, %v86
    %v88 = vrot.slane %v87, 1
    %v89 = vadd.f32 %v87, %v88
    %v90 = vadd.f32 %v81, %v89
    %vm91 = vcmask 253952
    %92 = vst.msk [vmem:[#allocation4] sm:$0x1] %vm91, %v90
    %93 = vadd.xlane.f32.xlu0 %v83
    %v94 = vpop.xlane.xlu0 %93
    %v95 = vsub.f32 1.0, %v94
    %v96 = vand.u32 2147483647, %v95
    %v97 = vsel %vm82, %v79, -inf
    %98 = vmax.xlane.f32.xlu0 %v97
    %v99 = vpop.xlane.xlu0 %98
    %v100 = vsub.f32 %v79, %v99
    %v101 = vmul.f32 %v100, 1.442695
    %v102 = vpow.pop %v101
    %v103 = vsel %vm82, %v102, 0.0
    %104 = vadd.xlane.f32.xlu0 %v103
    %v105 = vpop.xlane.xlu0 %104
    %v106 = vlog2.pop %v105
    %v107 = vmul.f32 %v106, 0.6931472
    %v108 = vadd.f32 %v99, %v107
    %v109 = vlaneseq
    %v110 = vand.u32 %v109, 127
    %111 = vset.pattern.permute.xlu0 0
    %112 = vperm.xlu0 %111, %v80
    %v113 = vpop.permute.xlu0 %112
    %vm114 = vcmp.eq.s32.totalorder %v110, %v113
    %v115 = vsel %vm114, %v79, 0.0
    %v116 = vsel %vm82, %v115, 0.0
    %117 = vadd.xlane.f32.xlu0 %v116
    %v118 = vpop.xlane.xlu0 %117
    %v119 = vsub.f32 %v108, %v118
    %v120 = vld [vmem:[#allocation2] sm:$0x1]
    %vm121 = vcmask 7168
    %v122 = vsel %vm121, %v119, 0.0
    %123 = vadd.xlane.f32.xlu0 %v122
    %v124 = vpop.xlane.xlu0 %123
    %v125 = vrot.slane %v124, 4
    %v126 = vadd.f32 %v124, %v125
    %v127 = vrot.slane %v126, 2
    %v128 = vadd.f32 %v126, %v127
    %v129 = vrot.slane %v128, 1
    %v130 = vadd.f32 %v128, %v129
    %s131 = vtos %v130
    %v132 = vstv %s131
    %v133 = vadd.f32 %v120, %v132
    %vm134 = vcmask 0
    %135 = vst.msk [vmem:[#allocation2] sm:$0x1] %vm134, %v133
    %v136 = vld [vmem:[#allocation3] sm:$0x1]
    %v137 = vsel %vm121, %v96, 0.0
    %138 = vadd.xlane.f32.xlu0 %v137
    %v139 = vpop.xlane.xlu0 %138
    %v140 = vrot.slane %v139, 4
    %v141 = vadd.f32 %v139, %v140
    %v142 = vrot.slane %v141, 2
    %v143 = vadd.f32 %v141, %v142
    %v144 = vrot.slane %v143, 1
    %v145 = vadd.f32 %v143, %v144
    %s146 = vtos %v145
    %v147 = vstv %s146
    %v148 = vadd.f32 %v136, %v147
    %149 = vst.msk [vmem:[#allocation3] sm:$0x1] %vm134, %v148
    // Predicated region
    $region14: #{lagrange_loss.1} parent=1 // pred_check
      %p150 = pneg %p70
    $region15: #{lagrange_loss.1} parent=1 // pred_check_branch
      %152 = sbr.rel (%p150) target = $region17
    $region16: #{lagrange_loss.1} parent=1 // pred_region
      %v153 = vld [vmem:[#allocation2] sm:$0x1]
      %154 = vst.msk [vmem:[#allocation5] sm:$0x1] %vm134, %v153
      %v155 = vld [vmem:[#allocation3] sm:$0x1]
      %156 = vst.msk [vmem:[#allocation7] sm:$0x1] %vm134, %v155
      %v157 = vld [vmem:[#allocation4] sm:$0x1]
      %158 = vst.msk [vmem:[%s4] sm:$0x1] %vm91, %v157
    $region17: #{lagrange_loss.1} parent=1 // pred_fallthru
      _
    // Predicated region
    $region18: #{lagrange_loss.1} parent=1 // pred_check
      _
    $region19: #{lagrange_loss.1} parent=1 // pred_check_branch
      %160 = sbr.rel (0) target = $region21
    $region20: #{lagrange_loss.1} parent=1 // pred_region
      %162 = vsyncadd [#allocation6], 0
      %s164 = sshll.u32 [#allocation5], 4
      %s165 = int_to_ptr.vmem [resolvable:$true] %s164
      %s166 = sshll.u32 %s2, 4
      %s167 = int_to_ptr.hbm [resolvable:$true] %s166
      %169 = dma.vmem_to_hbm [thread:$0]  %s165, 16, %s167, [#allocation6]
    $region21: #{lagrange_loss.1} parent=1 // pred_fallthru
      _
    // Predicated region
    $region22: #{lagrange_loss.1} parent=1 // pred_check
      _
    $region23: #{lagrange_loss.1} parent=1 // pred_check_branch
      %171 = sbr.rel (0) target = $region25
    $region24: #{lagrange_loss.1} parent=1 // pred_region
      %173 = vsyncadd [#allocation8], 0
      %s175 = sshll.u32 [#allocation7], 4
      %s176 = int_to_ptr.vmem [resolvable:$true] %s175
      %s177 = sshll.u32 %s3, 4
      %s178 = int_to_ptr.hbm [resolvable:$true] %s177
      %180 = dma.vmem_to_hbm [thread:$0]  %s176, 16, %s178, [#allocation8]
    $region25: #{lagrange_loss.1} parent=1 // pred_fallthru
      _
    // Predicated region
    $region26: #{lagrange_loss.1} parent=1 // pred_check
      _
    $region27: #{lagrange_loss.1} parent=1 // pred_check_branch
      %182 = sbr.rel (0) target = $region29
    $region28: #{lagrange_loss.1} parent=1 // pred_region
      _
    $region29: #{lagrange_loss.1} parent=1 // pred_fallthru
      _
    // Predicated region
    $region30: #{lagrange_loss.1} parent=1 // pred_check
      _
    $region31: #{lagrange_loss.1} parent=1 // pred_check_branch
      %184 = sbr.rel (0) target = $region33
    $region32: #{lagrange_loss.1} parent=1 // pred_region
      %186 = dma.done [#allocation6], 16
    $region33: #{lagrange_loss.1} parent=1 // pred_fallthru
      _
    // Predicated region
    $region34: #{lagrange_loss.1} parent=1 // pred_check
      _
    $region35: #{lagrange_loss.1} parent=1 // pred_check_branch
      %188 = sbr.rel (0) target = $region37
    $region36: #{lagrange_loss.1} parent=1 // pred_region
      %190 = dma.done [#allocation8], 16
    $region37: #{lagrange_loss.1} parent=1 // pred_fallthru
      _
    // Predicated region
    $region38: #{lagrange_loss.1} parent=1 // pred_check
      _
    $region39: #{lagrange_loss.1} parent=1 // pred_check_branch
      %192 = sbr.rel (0) target = $region41
    $region40: #{lagrange_loss.1} parent=1 // pred_region
      _
    $region41: #{lagrange_loss.1} parent=1 // pred_fallthru
      _
    %193 = vsyncpa [#allocation6], 1
    %194 = vsyncpa [#allocation8], 1

</llo_original>
